<compile_context>
chip_gen: v6e
topology: v6e:2x2x1
jax: 0.10.0
libtpu: 0.0.40
codegen_flags: <defaults>
</compile_context>

<pallas_src>
import jax
import jax.numpy as jnp
from jax.experimental import pallas as pl
from jax.experimental.pallas import tpu as pltpu


def _round_up(x, m):
    return (x + m - 1) // m * m


def _make_ffn_kernel(use_scratch, mxu_dtype):
    """Build the FFN kernel body.

    use_scratch: if True, accumulate in an f32 VMEM scratch and cast into
                 o_ref at the last k step (needed when o_ref is not f32).
                 If False, accumulate directly into the resident o_ref.
    mxu_dtype:   optional dtype to cast the x tile to before the first matmul
                 (weights are cast host-side).
    """

    def kernel(x_ref, w1_ref, b1_ref, w2_ref, b2_ref, o_ref, *scratch):
        acc_ref = scratch[0] if use_scratch else o_ref
        k = pl.program_id(1)

        x = x_ref[...]
        if mxu_dtype is not None and x.dtype != jnp.dtype(mxu_dtype):
            x = x.astype(mxu_dtype)

        # First matmul: native/requested-dtype MXU operands, f32 accumulation.
        h = jnp.dot(x, w1_ref[...], preferred_element_type=jnp.float32)
        h = h + b1_ref[...].astype(jnp.float32)

        # tanh-approx GELU (matches the PyTorch GELU module), computed in f32.
        c = jnp.float32(0.7978845608028654)  # sqrt(2/pi)
        g = 0.5 * h * (1.0 + jnp.tanh(c * (h + 0.044715 * (h * h) * h)))

        # Second matmul over this hidden-dim slice.
        part = jnp.dot(g.astype(w2_ref.dtype), w2_ref[...],
                       preferred_element_type=jnp.float32)

        @pl.when(k == 0)
        def _():
            # First hidden slice: store directly (no zero-init pass), fold b2 in.
            acc_ref[...] = part + b2_ref[...].astype(jnp.float32)

        @pl.when(k > 0)
        def _():
            acc_ref[...] += part

        if use_scratch:
            @pl.when(k == pl.num_programs(1) - 1)
            def _():
                o_ref[...] = acc_ref[...].astype(o_ref.dtype)

    return kernel


def _vmem_capacity_bytes():
    """Per-core VMEM capacity; conservative 64 MiB fallback (safe on v7x)."""
    try:
        info = pltpu.get_tpu_info()
        cap = getattr(info, "vmem_capacity_bytes", None)
        if cap:
            return int(cap)
    except Exception:
        pass
    return 64 * 1024 * 1024


def _vmem_footprint_bytes(tm, th, e_pad, x_bytes, w_bytes, out_bytes, use_scratch):
    f = 2 * tm * e_pad * x_bytes           # x rows, double-buffered
    f += 2 * e_pad * th * w_bytes          # w1 slice, double-buffered
    f += 2 * th * e_pad * w_bytes          # w2 slice, double-buffered
    f += 2 * (th + e_pad) * w_bytes        # bias slices
    f += 2 * tm * e_pad * out_bytes        # output rows, double-buffered
    if use_scratch:
        f += tm * e_pad * 4                # f32 accumulator scratch
    f += 2 * tm * th * 4                   # f32 hidden/GELU intermediates
    return f


def _auto_tiles(M, h_round128, e_pad, x_bytes, w_bytes, out_bytes,
                use_scratch, budget):
    """Largest (tm, th) whose footprint fits the budget; tm is the priority
    lever (weight re-streaming is once per row tile)."""
    tm_cap = _round_up(max(M, 1), 16)
    if M >= 256:
        # Keep >= 2 row blocks so the "parallel" axis can split across 2 TCs.
        tm_cap = min(tm_cap, _round_up((M + 1) // 2, 16))

    for tm in (512, 256, 128, 64, 32, 16):
        tm_eff = min(tm, tm_cap)
        for th in (1024, 512, 256, 128):
            th_eff = min(th, h_round128)
            if _vmem_footprint_bytes(tm_eff, th_eff, e_pad, x_bytes, w_bytes,
                                     out_bytes, use_scratch) <= budget:
                return tm_eff, th_eff
    return min(16, tm_cap), min(128, h_round128)


def feed_forward(x, w1, b1, w2, b2, *, tm=None, th=None, mxu_dtype=None):
    """x: [B, T, E]; w1: [E, H]; b1: [H]; w2: [H, E]; b2: [E]  (H = 4*E).

    Weights are stored [in, out] (transpose of PyTorch's nn.Linear weight).
    tm/th default to None -> auto-sized from the device's VMEM capacity.
    mxu_dtype (e.g. jnp.bfloat16) optionally casts the MXU operands; keeps f32
    accumulation but loosens accuracy vs. a pure-f32 reference.
    """
    B, T, E = x.shape
    H = w1.shape[1]
    M = B * T
    out_dtype = x.dtype
    use_scratch = jnp.dtype(out_dtype) != jnp.dtype(jnp.float32)

    # Lane-dense padding of last dims (multiples of 128); zero padding is exact.
    E_pad = _round_up(E, 128)
    H_round128 = _round_up(H, 128)

    w_store_dtype = w1.dtype if mxu_dtype is None else jnp.dtype(mxu_dtype)
    x_bytes = jnp.dtype(x.dtype).itemsize
    w_bytes = jnp.dtype(w_store_dtype).itemsize
    out_bytes = jnp.dtype(out_dtype).itemsize

    vmem_cap = _vmem_capacity_bytes()
    budget = int(vmem_cap * 0.70)          # ~30% headroom for Mosaic internals

    if tm is None or th is None:
        auto_tm, auto_th = _auto_tiles(M, H_round128, E_pad, x_bytes, w_bytes,
                                       out_bytes, use_scratch, budget)
        tm = auto_tm if tm is None else tm
        th = auto_th if th is None else th

    tm_eff = min(_round_up(tm, 16), _round_up(M, 16))
    th_eff = min(_round_up(th, 128), H_round128)
    M_pad = _round_up(M, tm_eff)
    H_pad = _round_up(H, th_eff)

    # Pad operands (zero padding is exact for this FFN).
    x2d = x.reshape(M, E)
    if (M_pad, E_pad) != (M, E):
        x2d = jnp.pad(x2d, ((0, M_pad - M), (0, E_pad - E)))
    w1p = w1 if (E_pad, H_pad) == (E, H) else jnp.pad(w1, ((0, E_pad - E), (0, H_pad - H)))
    w2p = w2 if (H_pad, E_pad) == (H, E) else jnp.pad(w2, ((0, H_pad - H), (0, E_pad - E)))
    b1p = (b1 if H_pad == H else jnp.pad(b1, (0, H_pad - H))).reshape(1, H_pad)
    b2p = (b2 if E_pad == E else jnp.pad(b2, (0, E_pad - E))).reshape(1, E_pad)

    if mxu_dtype is not None:
        w1p = w1p.astype(mxu_dtype)
        w2p = w2p.astype(mxu_dtype)

    # Derive the VMEM limit from the actual footprint, capped under capacity.
    footprint = _vmem_footprint_bytes(tm_eff, th_eff, E_pad, x_bytes, w_bytes,
                                      out_bytes, use_scratch)
    vmem_limit = max(footprint + (16 << 20), 32 << 20)
    vmem_limit = min(vmem_limit, int(vmem_cap * 0.90))
    vmem_limit = int(max(vmem_limit, footprint))

    grid = (M_pad // tm_eff, H_pad // th_eff)
    kernel = _make_ffn_kernel(use_scratch, mxu_dtype)
    scratch_shapes = ([pltpu.VMEM((tm_eff, E_pad), jnp.float32)]
                      if use_scratch else [])

    out2d = pl.pallas_call(
        kernel,
        out_shape=jax.ShapeDtypeStruct((M_pad, E_pad), out_dtype),
        grid_spec=pltpu.PrefetchScalarGridSpec(
            num_scalar_prefetch=0,
            grid=grid,
            in_specs=[
                pl.BlockSpec((tm_eff, E_pad), lambda i, k: (i, 0)),   # x rows
                pl.BlockSpec((E_pad, th_eff), lambda i, k: (0, k)),   # w1 slice
                pl.BlockSpec((1, th_eff), lambda i, k: (0, k)),       # b1 slice
                pl.BlockSpec((th_eff, E_pad), lambda i, k: (k, 0)),   # w2 slice
                pl.BlockSpec((1, E_pad), lambda i, k: (0, 0)),        # b2
            ],
            out_specs=pl.BlockSpec((tm_eff, E_pad), lambda i, k: (i, 0)),
            scratch_shapes=scratch_shapes,
        ),
        compiler_params=pltpu.CompilerParams(
            dimension_semantics=("parallel", "arbitrary"),
            vmem_limit_bytes=vmem_limit,
        ),
    )(x2d, w1p, b1p, w2p, b2p)

    return out2d[:M, :E].reshape(B, T, E)


def _reference(x, w1, b1, w2, b2):
    h = jnp.dot(x, w1, precision=jax.lax.Precision.HIGHEST) + b1
    c = jnp.sqrt(2.0 / jnp.pi)
    g = 0.5 * h * (1.0 + jnp.tanh(c * (h + 0.044715 * h ** 3)))
    return jnp.dot(g, w2, precision=jax.lax.Precision.HIGHEST) + b2


if __name__ == "__main__":
    # config['emb_dim'] = 32  ->  hidden = 4 * 32 = 128
    # NOTE: this tiny shape is a correctness smoke test only; do not use it to
    # draw performance conclusions (tune/benchmark at M >= 1024, E >= 1024).
    B, T, E = 2, 8, 32
    H = 4 * E

    key = jax.random.PRNGKey(0)
    kx, k1, kb1, k2, kb2 = jax.random.split(key, 5)

    x = jax.random.normal(kx, (B, T, E), dtype=jnp.float32)

    # Deterministic Linear-style init (uniform +/- 1/sqrt(fan_in)), stored [in, out]
    lim1 = 1.0 / float(E) ** 0.5
    w1 = jax.random.uniform(k1, (E, H), jnp.float32, -lim1, lim1)
    b1 = jax.random.uniform(kb1, (H,), jnp.float32, -lim1, lim1)

    lim2 = 1.0 / float(H) ** 0.5
    w2 = jax.random.uniform(k2, (H, E), jnp.float32, -lim2, lim2)
    b2 = jax.random.uniform(kb2, (E,), jnp.float32, -lim2, lim2)

    out = feed_forward(x, w1, b1, w2, b2)
    out = jax.block_until_ready(out)

    ref = _reference(x, w1, b1, w2, b2)
    assert out.shape == (B, T, E)
    max_err = float(jnp.max(jnp.abs(out - ref)))
    assert jnp.allclose(out, ref, atol=1e-4, rtol=1e-4), \
        f"mismatch vs reference (max err {max_err})"

    print("KERNEL_OK")
</pallas_src>

<mosaic_0001>
module attributes {stable_mosaic.version = 11 : i64} {
  func.func @kernel(%arg0: i32, %arg1: i32, %arg2: memref<16x128xf32, #tpu.memory_space<vmem>>, %arg3: memref<128x128xf32, #tpu.memory_space<vmem>>, %arg4: memref<1x128xf32, #tpu.memory_space<vmem>>, %arg5: memref<128x128xf32, #tpu.memory_space<vmem>>, %arg6: memref<1x128xf32, #tpu.memory_space<vmem>>, %arg7: memref<16x128xf32, #tpu.memory_space<vmem>>) attributes {dimension_semantics = [#tpu.dimension_semantics<parallel>, #tpu.dimension_semantics<arbitrary>], iteration_bounds = array<i64: 1, 1>, scalar_prefetch = 0 : i64, scratch_operands = 0 : i64, tpu.core_type = #tpu.core_type<tc>, window_params = [{transform_indices = @transform_0, window_bounds = array<i64: 16, 128>}, {transform_indices = @transform_1, window_bounds = array<i64: 128, 128>}, {transform_indices = @transform_2, window_bounds = array<i64: 1, 128>}, {transform_indices = @transform_3, window_bounds = array<i64: 128, 128>}, {pipeline_mode = #tpu.pipeline_mode<synchronous>, transform_indices = @transform_4, window_bounds = array<i64: 1, 128>}, {transform_indices = @transform_5, window_bounds = array<i64: 16, 128>}]} {
    %c0 = arith.constant 0 : index
    %c0_0 = arith.constant 0 : index
    %0 = vector.load %arg2[%c0, %c0_0] : memref<16x128xf32, #tpu.memory_space<vmem>>, vector<16x128xf32>
    %c0_1 = arith.constant 0 : index
    %c0_2 = arith.constant 0 : index
    %1 = vector.load %arg3[%c0_1, %c0_2] : memref<128x128xf32, #tpu.memory_space<vmem>>, vector<128x128xf32>
    %cst = arith.constant dense<0.000000e+00> : vector<16x128xf32>
    %2 = tpu.matmul %0, %1, %cst {dimension_numbers = #tpu.dot_dimension_numbers<[1], [0], [0], [1], [0, 0, 1, 1], [], []>} : vector<16x128xf32>, vector<128x128xf32>, vector<16x128xf32> -> vector<16x128xf32>
    %c0_3 = arith.constant 0 : index
    %c0_4 = arith.constant 0 : index
    %3 = vector.load %arg4[%c0_3, %c0_4] : memref<1x128xf32, #tpu.memory_space<vmem>>, vector<1x128xf32>
    %4 = vector.broadcast %3 : vector<1x128xf32> to vector<16x128xf32>
    %5 = arith.addf %2, %4 : vector<16x128xf32>
    %cst_5 = arith.constant 5.000000e-01 : f32
    %6 = vector.broadcast %cst_5 : f32 to vector<16x128xf32>
    %7 = arith.mulf %6, %5 : vector<16x128xf32>
    %8 = arith.mulf %5, %5 : vector<16x128xf32>
    %cst_6 = arith.constant 4.471500e-02 : f32
    %9 = vector.broadcast %cst_6 : f32 to vector<16x128xf32>
    %10 = arith.mulf %9, %8 : vector<16x128xf32>
    %11 = arith.mulf %10, %5 : vector<16x128xf32>
    %12 = arith.addf %5, %11 : vector<16x128xf32>
    %cst_7 = arith.constant 0.797884583 : f32
    %13 = vector.broadcast %cst_7 : f32 to vector<16x128xf32>
    %14 = arith.mulf %13, %12 : vector<16x128xf32>
    %15 = math.tanh %14 : vector<16x128xf32>
    %cst_8 = arith.constant 1.000000e+00 : f32
    %16 = vector.broadcast %cst_8 : f32 to vector<16x128xf32>
    %17 = arith.addf %16, %15 : vector<16x128xf32>
    %18 = arith.mulf %7, %17 : vector<16x128xf32>
    %c0_9 = arith.constant 0 : index
    %c0_10 = arith.constant 0 : index
    %19 = vector.load %arg5[%c0_9, %c0_10] : memref<128x128xf32, #tpu.memory_space<vmem>>, vector<128x128xf32>
    %cst_11 = arith.constant dense<0.000000e+00> : vector<16x128xf32>
    %20 = tpu.matmul %18, %19, %cst_11 {dimension_numbers = #tpu.dot_dimension_numbers<[1], [0], [0], [1], [0, 0, 1, 1], [], []>} : vector<16x128xf32>, vector<128x128xf32>, vector<16x128xf32> -> vector<16x128xf32>
    %c0_i32 = arith.constant 0 : i32
    %21 = arith.cmpi eq, %arg1, %c0_i32 : i32
    %22 = arith.extui %21 : i1 to i32
    %c0_i32_12 = arith.constant 0 : i32
    %23 = arith.cmpi ne, %22, %c0_i32_12 : i32
    scf.if %23 {
      %c0_15 = arith.constant 0 : index
      %c0_16 = arith.constant 0 : index
      %27 = vector.load %arg6[%c0_15, %c0_16] : memref<1x128xf32, #tpu.memory_space<vmem>>, vector<1x128xf32>
      %28 = vector.broadcast %27 : vector<1x128xf32> to vector<16x128xf32>
      %29 = arith.addf %20, %28 : vector<16x128xf32>
      %c0_17 = arith.constant 0 : index
      %c0_18 = arith.constant 0 : index
      %30 = vector.load %arg7[%c0_17, %c0_18] : memref<16x128xf32, #tpu.memory_space<vmem>>, vector<16x128xf32>
      tpu.vector_store %arg7[%c0_17, %c0_18], %29 {strides = array<i32>} : memref<16x128xf32, #tpu.memory_space<vmem>>, vector<16x128xf32>,
    } else {
    }
    %c0_i32_13 = arith.constant 0 : i32
    %24 = arith.cmpi sgt, %arg1, %c0_i32_13 : i32
    %25 = arith.extui %24 : i1 to i32
    %c0_i32_14 = arith.constant 0 : i32
    %26 = arith.cmpi ne, %25, %c0_i32_14 : i32
    scf.if %26 {
      %c0_15 = arith.constant 0 : index
      %c0_16 = arith.constant 0 : index
      %27 = vector.load %arg7[%c0_15, %c0_16] : memref<16x128xf32, #tpu.memory_space<vmem>>, vector<16x128xf32>
      %28 = arith.addf %27, %20 : vector<16x128xf32>
      %c0_17 = arith.constant 0 : index
      %c0_18 = arith.constant 0 : index
      %29 = vector.load %arg7[%c0_17, %c0_18] : memref<16x128xf32, #tpu.memory_space<vmem>>, vector<16x128xf32>
      tpu.vector_store %arg7[%c0_17, %c0_18], %28 {strides = array<i32>} : memref<16x128xf32, #tpu.memory_space<vmem>>, vector<16x128xf32>,
    } else {
    }
    return
  }
  func.func @transform_0(%arg0: i32, %arg1: i32) -> (i32, i32) {
    %c0_i32 = arith.constant 0 : i32
    %c0_i32_0 = arith.constant 0 : i32
    return %arg0, %c0_i32 : i32, i32
  }
  func.func @transform_1(%arg0: i32, %arg1: i32) -> (i32, i32) {
    %c0_i32 = arith.constant 0 : i32
    %c0_i32_0 = arith.constant 0 : i32
    return %c0_i32, %arg1 : i32, i32
  }
  func.func @transform_2(%arg0: i32, %arg1: i32) -> (i32, i32) {
    %c0_i32 = arith.constant 0 : i32
    %c0_i32_0 = arith.constant 0 : i32
    return %c0_i32, %arg1 : i32, i32
  }
  func.func @transform_3(%arg0: i32, %arg1: i32) -> (i32, i32) {
    %c0_i32 = arith.constant 0 : i32
    %c0_i32_0 = arith.constant 0 : i32
    return %arg1, %c0_i32 : i32, i32
  }
  func.func @transform_4(%arg0: i32, %arg1: i32) -> (i32, i32) {
    %c0_i32 = arith.constant 0 : i32
    %c0_i32_0 = arith.constant 0 : i32
    %c0_i32_1 = arith.constant 0 : i32
    return %c0_i32, %c0_i32_0 : i32, i32
  }
  func.func @transform_5(%arg0: i32, %arg1: i32) -> (i32, i32) {
    %c0_i32 = arith.constant 0 : i32
    %c0_i32_0 = arith.constant 0 : i32
    return %arg0, %c0_i32 : i32, i32
  }
}

</mosaic_0001>

<llo_original>
// kernel: tpu_custom_call.1
$region0: #{tpu_custom_call.1}
  #allocation0 [shape = 'u32[]', space=smem, size = 0x4, offset = 0x4, fixed_abs, tag = 'smem constant byte address 0x4 - core index']
  #allocation1 [shape = 'u32[144,128]{1,0:T(1,128)}', space=vmem, size = 0x12000, scoped, tag = 'internal scratch']
  %s0 = inlined_call_operand.hbm [shape: f32[16,128], index: 0, kind: input, shape index: {}]
  %s1 = inlined_call_operand.hbm [shape: f32[128,128], index: 1, kind: input, shape index: {}]
  %s2 = inlined_call_operand.vmem [shape: f32[1,128], index: 2, kind: input, shape index: {}]
  %s3 = inlined_call_operand.hbm [shape: f32[128,128], index: 3, kind: input, shape index: {}]
  %s4 = inlined_call_operand.vmem [shape: f32[1,128], index: 4, kind: input, shape index: {}]
  %s5 = inlined_call_operand.hbm [shape: f32[16,128], index: 5, kind: output, shape index: {}]
  %s6 = sld [smem:[#allocation0]]
  $region50: #{tpu_custom_call.1} parent=0
    _
  %s8 = ssub.s32 1, %s6
  %s9 = scalar_select 0, %s8, %s6
  $region1: #{tpu_custom_call.1} parent=0
    #allocation2 [shape = 'u8[8192]{0}', space=vmem, size = 0x2000, scoped, tag = 'input window, operand 0, single buffered']
    #allocation3 [shape = 's32[1]{0}', space=sflag, size = 0x4, scoped, tag = 'scoped memory for tpu_custom_call.1']
    #allocation4 [shape = 's32[1]{0}', space=sflag, size = 0x4, scoped, tag = 'scoped memory for tpu_custom_call.1']
    #allocation5 [shape = 'u8[65536]{0}', space=vmem, size = 0x10000, scoped, tag = 'input window, operand 1, single buffered']
    #allocation6 [shape = 's32[1]{0}', space=sflag, size = 0x4, scoped, tag = 'scoped memory for tpu_custom_call.1']
    #allocation7 [shape = 'u8[65536]{0}', space=vmem, size = 0x10000, scoped, tag = 'input window, operand 3, single buffered']
    #allocation8 [shape = 'u8[8192]{0}', space=vmem, size = 0x2000, scoped, tag = 'output window, operand 0, single buffered']
    %10 = vsyncpa [#allocation3], 0
    %11 = vsyncpa [#allocation6], 0
    %12 = vsyncpa [#allocation4], 0
    // Predicated region
    $region2: #{tpu_custom_call.1} parent=1 // pred_check
      _
    $region3: #{tpu_custom_call.1} parent=1 // pred_check_branch
      %14 = sbr.rel (0) target = $region5
    $region4: #{tpu_custom_call.1} parent=1 // pred_region
      %s16 = ssub.s32 256, 256
      %17 = vsyncadd [#allocation3], %s16
      %s18 = sshll.u32 [#allocation2], 4
      %s19 = int_to_ptr.vmem [resolvable:$true] %s18
      %24 = dma.hbm_to_vmem [thread:$0]  %s0, 256, %s19, [#allocation3], 128, 128, 8
    $region5: #{tpu_custom_call.1} parent=1 // pred_fallthru
      _
    // Predicated region
    $region6: #{tpu_custom_call.1} parent=1 // pred_check
      _
    $region7: #{tpu_custom_call.1} parent=1 // pred_check_branch
      %26 = sbr.rel (0) target = $region9
    $region8: #{tpu_custom_call.1} parent=1 // pred_region
      %s28 = ssub.s32 2048, 2048
      %29 = vsyncadd [#allocation6], %s28
      %s30 = sshll.u32 [#allocation5], 4
      %s31 = int_to_ptr.vmem [resolvable:$true] %s30
      %36 = dma.hbm_to_vmem [thread:$0]  %s1, 2048, %s31, [#allocation6], 128, 128, 8
    $region9: #{tpu_custom_call.1} parent=1 // pred_fallthru
      _
    // Predicated region
    $region10: #{tpu_custom_call.1} parent=1 // pred_check
      _
    $region11: #{tpu_custom_call.1} parent=1 // pred_check_branch
      %38 = sbr.rel (0) target = $region13
    $region12: #{tpu_custom_call.1} parent=1 // pred_region
      _
    $region13: #{tpu_custom_call.1} parent=1 // pred_fallthru
      _
    // Predicated region
    $region14: #{tpu_custom_call.1} parent=1 // pred_check
      _
    $region15: #{tpu_custom_call.1} parent=1 // pred_check_branch
      %40 = sbr.rel (0) target = $region17
    $region16: #{tpu_custom_call.1} parent=1 // pred_region
      %s42 = ssub.s32 2048, 2048
      %43 = vsyncadd [#allocation6], %s42
      %s44 = sshll.u32 [#allocation7], 4
      %s45 = int_to_ptr.vmem [resolvable:$true] %s44
      %50 = dma.hbm_to_vmem [thread:$0]  %s3, 2048, %s45, [#allocation6], 128, 128, 8
    $region17: #{tpu_custom_call.1} parent=1 // pred_fallthru
      _
    // Predicated region
    $region18: #{tpu_custom_call.1} parent=1 // pred_check
      _
    $region19: #{tpu_custom_call.1} parent=1 // pred_check_branch
      %52 = sbr.rel (0) target = $region21
    $region20: #{tpu_custom_call.1} parent=1 // pred_region
      _
    $region21: #{tpu_custom_call.1} parent=1 // pred_fallthru
      _
    // Predicated region
    $region22: #{tpu_custom_call.1} parent=1 // pred_check
      _
    $region23: #{tpu_custom_call.1} parent=1 // pred_check_branch
      %54 = sbr.rel (0) target = $region25
    $region24: #{tpu_custom_call.1} parent=1 // pred_region
      %55 = dma.done [#allocation3], 256
    $region25: #{tpu_custom_call.1} parent=1 // pred_fallthru
      _
    // Predicated region
    $region26: #{tpu_custom_call.1} parent=1 // pred_check
      _
    $region27: #{tpu_custom_call.1} parent=1 // pred_check_branch
      %57 = sbr.rel (0) target = $region29
    $region28: #{tpu_custom_call.1} parent=1 // pred_region
      %58 = dma.done [#allocation6], 2048
    $region29: #{tpu_custom_call.1} parent=1 // pred_fallthru
      _
    // Predicated region
    $region30: #{tpu_custom_call.1} parent=1 // pred_check
      _
    $region31: #{tpu_custom_call.1} parent=1 // pred_check_branch
      %60 = sbr.rel (0) target = $region33
    $region32: #{tpu_custom_call.1} parent=1 // pred_region
      %61 = dma.done [#allocation6], 2048
    $region33: #{tpu_custom_call.1} parent=1 // pred_fallthru
      _
    %v62 = vld [vmem:[#allocation2] sm:$0xff]
    %v63 = vld [vmem:[#allocation2 + $0x8] sm:$0xff]
    %v64 = vld [vmem:[#allocation5] sm:$0xff]
    %v65 = vld [vmem:[#allocation5 + $0x8] sm:$0xff]
    %v66 = vld [vmem:[#allocation5 + $0x10] sm:$0xff]
    %v67 = vld [vmem:[#allocation5 + $0x18] sm:$0xff]
    %v68 = vld [vmem:[#allocation5 + $0x20] sm:$0xff]
    %v69 = vld [vmem:[#allocation5 + $0x28] sm:$0xff]
    %v70 = vld [vmem:[#allocation5 + $0x30] sm:$0xff]
    %v71 = vld [vmem:[#allocation5 + $0x38] sm:$0xff]
    %v72 = vld [vmem:[#allocation5 + $0x40] sm:$0xff]
    %v73 = vld [vmem:[#allocation5 + $0x48] sm:$0xff]
    %v74 = vld [vmem:[#allocation5 + $0x50] sm:$0xff]
    %v75 = vld [vmem:[#allocation5 + $0x58] sm:$0xff]
    %v76 = vld [vmem:[#allocation5 + $0x60] sm:$0xff]
    %v77 = vld [vmem:[#allocation5 + $0x68] sm:$0xff]
    %v78 = vld [vmem:[#allocation5 + $0x70] sm:$0xff]
    %v79 = vld [vmem:[#allocation5 + $0x78] sm:$0xff]
    %v80 = vld [vmem:[%s2] sm:$0x1]
    %v82 = vlaneseq
    %v83 = vshrl.u32 %v82, 7
    %v84 = vsub.s32 0, %v83
    %v85 = vrot.slane %v80, %v84
    %87 = vmatprep.subr.mxu0 0.0
    %88 = vmatpush1.msra.mxu0 %v79
    %89 = vmatprep.subr.mxu0 0.0
    %90 = vmatpush1.msra.mxu0 %v78
    %91 = vmatprep.subr.mxu0 0.0
    %92 = vmatpush1.msra.mxu0 %v77
    %93 = vmatprep.subr.mxu0 0.0
    %94 = vmatpush1.msra.mxu0 %v76
    %95 = vmatprep.subr.mxu0 0.0
    %96 = vmatpush1.msra.mxu0 %v75
    %97 = vmatprep.subr.mxu0 0.0
    %98 = vmatpush1.msra.mxu0 %v74
    %99 = vmatprep.subr.mxu0 0.0
    %100 = vmatpush1.msra.mxu0 %v73
    %101 = vmatprep.subr.mxu0 0.0
    %102 = vmatpush1.msra.mxu0 %v72
    %103 = vmatprep.subr.mxu0 0.0
    %104 = vmatpush1.msra.mxu0 %v71
    %105 = vmatprep.subr.mxu0 0.0
    %106 = vmatpush1.msra.mxu0 %v70
    %107 = vmatprep.subr.mxu0 0.0
    %108 = vmatpush1.msra.mxu0 %v69
    %109 = vmatprep.subr.mxu0 0.0
    %110 = vmatpush1.msra.mxu0 %v68
    %111 = vmatprep.subr.mxu0 0.0
    %112 = vmatpush1.msra.mxu0 %v67
    %113 = vmatprep.subr.mxu0 0.0
    %114 = vmatpush1.msra.mxu0 %v66
    %115 = vmatprep.subr.mxu0 0.0
    %116 = vmatpush1.msra.mxu0 %v65
    %117 = vmatprep.subr.mxu0 0.0
    %118 = vmatpush1.msra.mxu0 %v64
    %119 = vmatprep.subr.mxu0 0.0
    %120 = vmatpush2.msra.mxu0 0.0
    %121 = vmatprep.subr.mxu0 0.0
    %122 = vmatpush2.msra.mxu0 0.0
    %123 = vmatprep.subr.mxu0 0.0
    %124 = vmatpush2.msra.mxu0 0.0
    %125 = vmatprep.subr.mxu0 0.0
    %126 = vmatpush2.msra.mxu0 0.0
    %127 = vmatprep.subr.mxu0 0.0
    %128 = vmatpush2.msra.mxu0 0.0
    %129 = vmatprep.subr.mxu0 0.0
    %130 = vmatpush2.msra.mxu0 0.0
    %131 = vmatprep.subr.mxu0 0.0
    %132 = vmatpush2.msra.mxu0 0.0
    %133 = vmatprep.subr.mxu0 0.0
    %134 = vmatpush2.msra.mxu0 0.0
    %135 = vmatprep.subr.mxu0 0.0
    %136 = vmatpush2.msra.mxu0 0.0
    %137 = vmatprep.subr.mxu0 0.0
    %138 = vmatpush2.msra.mxu0 0.0
    %139 = vmatprep.subr.mxu0 0.0
    %140 = vmatpush2.msra.mxu0 0.0
    %141 = vmatprep.subr.mxu0 0.0
    %142 = vmatpush2.msra.mxu0 0.0
    %143 = vmatprep.subr.mxu0 0.0
    %144 = vmatpush2.msra.mxu0 0.0
    %145 = vmatprep.subr.mxu0 0.0
    %146 = vmatpush2.msra.mxu0 0.0
    %147 = vmatprep.subr.mxu0 0.0
    %148 = vmatpush2.msra.mxu0 0.0
    %149 = vmatprep.subr.mxu0 0.0
    %150 = vmatpush2.msra.mxu0 0.0
    %151 = vmatprep.mubr.f32.mxu0 0.0
    %152 = vmatmul.mubr.f32.gmra.mxu0 %v62
    %v153 = vpop.f32.mrf.mxu0
    %v154 = vadd.f32 %v85, %v153
    %v155 = vpop.f32.mrf.mxu0
    %156 = vmatprep.mubr.f32.mxu0 0.0
    %157 = vmatmul.mubr.f32.gmra.mxu0 %v63
    %v158 = vpop.f32.mrf.mxu0
    %v159 = vadd.f32 %v85, %v158
    %v160 = vpop.f32.mrf.mxu0
    %161 = vdwg.mxu0
    %v162 = vmul.f32 %v154, 0.5
    %v163 = vmul.f32 %v159, 0.5
    %v164 = vmul.f32 %v154, %v154
    %v165 = vmul.f32 %v159, %v159
    %v166 = vmul.f32 %v164, 0.044715
    %v167 = vmul.f32 %v165, 0.044715
    %v168 = vmul.f32 %v166, %v154
    %v169 = vmul.f32 %v167, %v159
    %v170 = vadd.f32 %v154, %v168
    %v171 = vadd.f32 %v159, %v169
    %v172 = vmul.f32 %v170, 0.7978846
    %v173 = vmul.f32 %v171, 0.7978846
    %v174 = vtanh.pop %v172
    %v175 = vtanh.pop %v173
    %v176 = vadd.f32 %v174, 1.0
    %v177 = vadd.f32 %v175, 1.0
    %v178 = vmul.f32 %v162, %v176
    %v179 = vmul.f32 %v163, %v177
    %v180 = vld [vmem:[#allocation7] sm:$0xff]
    %v181 = vld [vmem:[#allocation7 + $0x8] sm:$0xff]
    %v182 = vld [vmem:[#allocation7 + $0x10] sm:$0xff]
    %v183 = vld [vmem:[#allocation7 + $0x18] sm:$0xff]
    %v184 = vld [vmem:[#allocation7 + $0x20] sm:$0xff]
    %v185 = vld [vmem:[#allocation7 + $0x28] sm:$0xff]
    %v186 = vld [vmem:[#allocation7 + $0x30] sm:$0xff]
    %v187 = vld [vmem:[#allocation7 + $0x38] sm:$0xff]
    %v188 = vld [vmem:[#allocation7 + $0x40] sm:$0xff]
    %v189 = vld [vmem:[#allocation7 + $0x48] sm:$0xff]
    %v190 = vld [vmem:[#allocation7 + $0x50] sm:$0xff]
    %v191 = vld [vmem:[#allocation7 + $0x58] sm:$0xff]
    %v192 = vld [vmem:[#allocation7 + $0x60] sm:$0xff]
    %v193 = vld [vmem:[#allocation7 + $0x68] sm:$0xff]
    %v194 = vld [vmem:[#allocation7 + $0x70] sm:$0xff]
    %v195 = vld [vmem:[#allocation7 + $0x78] sm:$0xff]
    %196 = vmatprep.subr.mxu0 0.0
    %197 = vmatpush1.msra.mxu0 %v195
    %198 = vmatprep.subr.mxu0 0.0
    %199 = vmatpush1.msra.mxu0 %v194
    %200 = vmatprep.subr.mxu0 0.0
    %201 = vmatpush1.msra.mxu0 %v193
    %202 = vmatprep.subr.mxu0 0.0
    %203 = vmatpush1.msra.mxu0 %v192
    %204 = vmatprep.subr.mxu0 0.0
    %205 = vmatpush1.msra.mxu0 %v191
    %206 = vmatprep.subr.mxu0 0.0
    %207 = vmatpush1.msra.mxu0 %v190
    %208 = vmatprep.subr.mxu0 0.0
    %209 = vmatpush1.msra.mxu0 %v189
    %210 = vmatprep.subr.mxu0 0.0
    %211 = vmatpush1.msra.mxu0 %v188
    %212 = vmatprep.subr.mxu0 0.0
    %213 = vmatpush1.msra.mxu0 %v187
    %214 = vmatprep.subr.mxu0 0.0
    %215 = vmatpush1.msra.mxu0 %v186
    %216 = vmatprep.subr.mxu0 0.0
    %217 = vmatpush1.msra.mxu0 %v185
    %218 = vmatprep.subr.mxu0 0.0
    %219 = vmatpush1.msra.mxu0 %v184
    %220 = vmatprep.subr.mxu0 0.0
    %221 = vmatpush1.msra.mxu0 %v183
    %222 = vmatprep.subr.mxu0 0.0
    %223 = vmatpush1.msra.mxu0 %v182
    %224 = vmatprep.subr.mxu0 0.0
    %225 = vmatpush1.msra.mxu0 %v181
    %226 = vmatprep.subr.mxu0 0.0
    %227 = vmatpush1.msra.mxu0 %v180
    %228 = vmatprep.subr.mxu0 0.0
    %229 = vmatpush2.msra.mxu0 0.0
    %230 = vmatprep.subr.mxu0 0.0
    %231 = vmatpush2.msra.mxu0 0.0
    %232 = vmatprep.subr.mxu0 0.0
    %233 = vmatpush2.msra.mxu0 0.0
    %234 = vmatprep.subr.mxu0 0.0
    %235 = vmatpush2.msra.mxu0 0.0
    %236 = vmatprep.subr.mxu0 0.0
    %237 = vmatpush2.msra.mxu0 0.0
    %238 = vmatprep.subr.mxu0 0.0
    %239 = vmatpush2.msra.mxu0 0.0
    %240 = vmatprep.subr.mxu0 0.0
    %241 = vmatpush2.msra.mxu0 0.0
    %242 = vmatprep.subr.mxu0 0.0
    %243 = vmatpush2.msra.mxu0 0.0
    %244 = vmatprep.subr.mxu0 0.0
    %245 = vmatpush2.msra.mxu0 0.0
    %246 = vmatprep.subr.mxu0 0.0
    %247 = vmatpush2.msra.mxu0 0.0
    %248 = vmatprep.subr.mxu0 0.0
    %249 = vmatpush2.msra.mxu0 0.0
    %250 = vmatprep.subr.mxu0 0.0
    %251 = vmatpush2.msra.mxu0 0.0
    %252 = vmatprep.subr.mxu0 0.0
    %253 = vmatpush2.msra.mxu0 0.0
    %254 = vmatprep.subr.mxu0 0.0
    %255 = vmatpush2.msra.mxu0 0.0
    %256 = vmatprep.subr.mxu0 0.0
    %257 = vmatpush2.msra.mxu0 0.0
    %258 = vmatprep.subr.mxu0 0.0
    %259 = vmatpush2.msra.mxu0 0.0
    %260 = vmatprep.mubr.f32.mxu0 0.0
    %261 = vmatmul.mubr.f32.gmra.mxu0 %v178
    %v262 = vpop.f32.mrf.mxu0
    %v263 = vadd.f32 0.0, %v262
    %v264 = vpop.f32.mrf.mxu0
    %265 = vmatprep.mubr.f32.mxu0 0.0
    %266 = vmatmul.mubr.f32.gmra.mxu0 %v179
    %v267 = vpop.f32.mrf.mxu0
    %v268 = vadd.f32 0.0, %v267
    %v269 = vpop.f32.mrf.mxu0
    %270 = vdwg.mxu0
    %p271 = scmp.eq.s32.totalorder 0, 0
    // Predicated region
    $region34: #{tpu_custom_call.1} parent=1 // pred_check
      %p272 = pneg %p271
    $region35: #{tpu_custom_call.1} parent=1 // pred_check_branch
      %274 = sbr.rel (%p272) target = $region37
    $region36: #{tpu_custom_call.1} parent=1 // pred_region
      %v275 = vld [vmem:[%s4] sm:$0x1]
      %v277 = vlaneseq
      %v278 = vshrl.u32 %v277, 7
      %v279 = vsub.s32 0, %v278
      %v280 = vrot.slane %v275, %v279
      %v282 = vadd.f32 %v263, %v280
      %v283 = vadd.f32 %v268, %v280
      %284 = vst [vmem:[#allocation8] sm:$0xff] %v282
      %285 = vst [vmem:[#allocation8 + $0x8] sm:$0xff] %v283
    $region37: #{tpu_custom_call.1} parent=1 // pred_fallthru
      _
    %p286 = scmp.gt.s32.totalorder 0, 0
    // Predicated region
    $region38: #{tpu_custom_call.1} parent=1 // pred_check
      %p287 = pneg %p286
    $region39: #{tpu_custom_call.1} parent=1 // pred_check_branch
      %289 = sbr.rel (%p287) target = $region41
    $region40: #{tpu_custom_call.1} parent=1 // pred_region
      %v290 = vld [vmem:[#allocation8] sm:$0xff]
      %v291 = vld [vmem:[#allocation8 + $0x8] sm:$0xff]
      %v292 = vadd.f32 %v290, %v263
      %v293 = vadd.f32 %v291, %v268
      %294 = vst [vmem:[#allocation8] sm:$0xff] %v292
      %295 = vst [vmem:[#allocation8 + $0x8] sm:$0xff] %v293
    $region41: #{tpu_custom_call.1} parent=1 // pred_fallthru
      _
    // Predicated region
    $region42: #{tpu_custom_call.1} parent=1 // pred_check
      _
    $region43: #{tpu_custom_call.1} parent=1 // pred_check_branch
      %297 = sbr.rel (0) target = $region45
    $region44: #{tpu_custom_call.1} parent=1 // pred_region
      %s299 = ssub.s32 256, 256
      %300 = vsyncadd [#allocation4], %s299
      %s301 = sshll.u32 [#allocation8], 4
      %s302 = int_to_ptr.vmem [resolvable:$true] %s301
      %307 = dma.vmem_to_hbm [thread:$0]  %s302, 256, %s5, [#allocation4], 128, 128, 8
    $region45: #{tpu_custom_call.1} parent=1 // pred_fallthru
      _
    // Predicated region
    $region46: #{tpu_custom_call.1} parent=1 // pred_check
      _
    $region47: #{tpu_custom_call.1} parent=1 // pred_check_branch
      %309 = sbr.rel (0) target = $region49
    $region48: #{tpu_custom_call.1} parent=1 // pred_region
      %310 = dma.done [#allocation4], 256
    $region49: #{tpu_custom_call.1} parent=1 // pred_fallthru
      _
    %311 = vsyncpa [#allocation3], 1
    %312 = vsyncpa [#allocation6], 1
    %313 = vsyncpa [#allocation4], 1

</llo_original>
